<compile_context>
chip_gen: v5e
topology: v5e:2x2
jax: 0.10.0
libtpu: 0.0.40
codegen_flags: <defaults>
</compile_context>

<pallas_src>
import functools

import jax
import jax.numpy as jnp
from jax import lax
from jax.experimental import pallas as pl
from jax.experimental.pallas import tpu as pltpu

_BIG = 1e30  # safe stand-in for +/- inf


def _triplet_tile_kernel(xc_ref, xa_ref, sqc_ref, sqa_ref, tc_ref, ta_ref,
                         vc_ref, o_ref, max_acc, min_acc, *, margin):
    # Grid: (i = anchor tile, j = candidate tile); j is the reduction axis.
    j = pl.program_id(1)

    @pl.when(j == 0)
    def _init():
        max_acc[...] = jnp.full(max_acc.shape, -_BIG, jnp.float32)
        min_acc[...] = jnp.full(min_acc.shape, _BIG, jnp.float32)

    # Gram tile (candidates x anchors) on the MXU: bf16 operands, f32 accumulate.
    gram = lax.dot_general(
        xc_ref[...].astype(jnp.bfloat16),           # (TN, D)
        xa_ref[...].astype(jnp.bfloat16),           # (TM, D)
        (((1,), (1,)), ((), ())),
        preferred_element_type=jnp.float32)         # (TN, TM)

    # Squared pairwise distances; sqrt deferred to the finalize step.
    dist2 = sqc_ref[...] + sqa_ref[...] - 2.0 * gram        # (TN,1)+(1,TM)-(TN,TM)

    same = tc_ref[...] == ta_ref[...]               # (TN,1)==(1,TM) -> (TN,TM)
    valid = vc_ref[...] > 0.5                       # (TN, 1): real (non-pad) candidates
    pos = jnp.logical_and(same, valid)
    neg = jnp.logical_and(jnp.logical_not(same), valid)

    # Running hardest-positive / hardest-negative squared distances per anchor.
    max_acc[...] = jnp.maximum(
        max_acc[...],
        jnp.max(jnp.where(pos, dist2, -_BIG), axis=0, keepdims=True))   # (1, TM)
    min_acc[...] = jnp.minimum(
        min_acc[...],
        jnp.min(jnp.where(neg, dist2, _BIG), axis=0, keepdims=True))    # (1, TM)

    @pl.when(j == pl.num_programs(1) - 1)
    def _finalize():
        # Clamp + sqrt only on the reduced per-anchor vectors (2*TM sqrts, not TM*TN).
        d_ap = jnp.sqrt(jnp.maximum(max_acc[...], 1e-12))
        d_an = jnp.sqrt(jnp.maximum(min_acc[...], 1e-12))
        hinge = jnp.maximum(d_ap - d_an + margin, 0.0)                  # (1, TM)
        o_ref[...] = hinge.reshape(1, 1, -1)                            # (1, 1, TM)


def triplet_loss(x, targets, margin=0.3, block=None):
    """x: (N, D) float32 features; targets: (N,) int labels. Returns scalar loss."""
    n, d = x.shape
    if block is None:
        # 256-aligned tiles for v6e/v7x MXU; fall back to 128 for tiny batches.
        block = 256 if n > 128 else 128
    tm = tn = block
    n_pad = pl.cdiv(n, block) * block
    g_m, g_n = n_pad // tm, n_pad // tn
    pad = n_pad - n

    x_pad = jnp.pad(x.astype(jnp.float32), ((0, pad), (0, 0)))
    sq = jnp.sum(x_pad * x_pad, axis=1)                                  # (n_pad,)
    sq_col = sq.reshape(n_pad, 1)                                        # candidates
    sq_row = sq.reshape(1, n_pad)                                        # anchors

    t_pad = jnp.pad(targets.astype(jnp.int32), (0, pad), constant_values=-1)
    t_col = t_pad.reshape(n_pad, 1)                                      # candidates
    t_row = t_pad.reshape(1, n_pad)                                      # anchors
    valid_col = (jnp.arange(n_pad) < n).astype(jnp.float32).reshape(n_pad, 1)

    kernel = functools.partial(_triplet_tile_kernel, margin=float(margin))

    per_row = pl.pallas_call(
        kernel,
        out_shape=jax.ShapeDtypeStruct((g_m, 1, tm), jnp.float32),
        grid_spec=pltpu.PrefetchScalarGridSpec(
            num_scalar_prefetch=0,
            grid=(g_m, g_n),
            in_specs=[
                pl.BlockSpec((tn, d), lambda i, j: (j, 0)),   # candidate features
                pl.BlockSpec((tm, d), lambda i, j: (i, 0)),   # anchor features
                pl.BlockSpec((tn, 1), lambda i, j: (j, 0)),   # candidate |x|^2 (column)
                pl.BlockSpec((1, tm), lambda i, j: (0, i)),   # anchor |x|^2 (lane row)
                pl.BlockSpec((tn, 1), lambda i, j: (j, 0)),   # candidate labels
                pl.BlockSpec((1, tm), lambda i, j: (0, i)),   # anchor labels (lane row)
                pl.BlockSpec((tn, 1), lambda i, j: (j, 0)),   # candidate validity
            ],
            out_specs=pl.BlockSpec((1, 1, tm), lambda i, j: (i, 0, 0)),
            scratch_shapes=[
                pltpu.VMEM((1, tm), jnp.float32),             # running max pos dist^2
                pltpu.VMEM((1, tm), jnp.float32),             # running min neg dist^2
            ],
        ),
        compiler_params=pltpu.CompilerParams(
            dimension_semantics=("parallel", "arbitrary")),
    )(x_pad, x_pad, sq_col, sq_row, t_col, t_row, valid_col)

    return jnp.mean(per_row.reshape(-1)[:n])


def _reference(x, targets, margin=0.3):
    # Pure-JAX reference mirroring the PyTorch forward (full f32).
    sq = jnp.sum(x * x, axis=1, keepdims=True)
    dist = jnp.sqrt(jnp.maximum(sq + sq.T - 2.0 * (x @ x.T), 1e-12))
    mask = targets[:, None] == targets[None, :]
    dist_ap = jnp.max(jnp.where(mask, dist, -jnp.inf), axis=1)
    dist_an = jnp.min(jnp.where(mask, jnp.inf, dist), axis=1)
    return jnp.mean(jnp.maximum(dist_ap - dist_an + margin, 0.0))


if __name__ == "__main__":
    key = jax.random.PRNGKey(0)
    N, D = 8, 32  # (batch_size, feat_dim)

    x = jax.random.normal(key, (N, D), dtype=jnp.float32)
    # 4 identities, 2 samples each: every anchor has >=1 positive and >=1 negative.
    targets = jnp.array([0, 0, 1, 1, 2, 2, 3, 3], dtype=jnp.int32)

    loss = triplet_loss(x, targets, margin=0.3)
    loss = jax.block_until_ready(loss)

    # Loose tolerance: kernel uses bf16 MXU operands (f32 accumulate) for the gram.
    ref = _reference(x, targets, margin=0.3)
    assert jnp.isfinite(loss), loss
    assert jnp.allclose(loss, ref, atol=5e-2, rtol=5e-2), (loss, ref)

    print("KERNEL_OK")
</pallas_src>

<mosaic_0001>
module attributes {stable_mosaic.version = 11 : i64} {
  func.func @_triplet_tile_kernel(%arg0: i32, %arg1: i32, %arg2: memref<128x32xf32, #tpu.memory_space<vmem>>, %arg3: memref<128x32xf32, #tpu.memory_space<vmem>>, %arg4: memref<128x1xf32, #tpu.memory_space<vmem>>, %arg5: memref<1x128xf32, #tpu.memory_space<vmem>>, %arg6: memref<128x1xi32, #tpu.memory_space<vmem>>, %arg7: memref<1x128xi32, #tpu.memory_space<vmem>>, %arg8: memref<128x1xf32, #tpu.memory_space<vmem>>, %arg9: memref<1x1x128xf32, #tpu.memory_space<vmem>>, %arg10: memref<1x128xf32, #tpu.memory_space<vmem>>, %arg11: memref<1x128xf32, #tpu.memory_space<vmem>>) attributes {dimension_semantics = [#tpu.dimension_semantics<parallel>, #tpu.dimension_semantics<arbitrary>], iteration_bounds = array<i64: 1, 1>, scalar_prefetch = 0 : i64, scratch_operands = 2 : i64, tpu.core_type = #tpu.core_type<tc>, window_params = [{transform_indices = @transform_0, window_bounds = array<i64: 128, 32>}, {transform_indices = @transform_1, window_bounds = array<i64: 128, 32>}, {transform_indices = @transform_2, window_bounds = array<i64: 128, 1>}, {transform_indices = @transform_3, window_bounds = array<i64: 1, 128>}, {transform_indices = @transform_4, window_bounds = array<i64: 128, 1>}, {transform_indices = @transform_5, window_bounds = array<i64: 1, 128>}, {transform_indices = @transform_6, window_bounds = array<i64: 128, 1>}, {transform_indices = @transform_7, window_bounds = array<i64: 1, 1, 128>}]} {
    %c0_i32 = arith.constant 0 : i32
    %0 = arith.cmpi eq, %arg1, %c0_i32 : i32
    %1 = arith.extui %0 : i1 to i32
    %c0_i32_0 = arith.constant 0 : i32
    %2 = arith.cmpi ne, %1, %c0_i32_0 : i32
    scf.if %2 {
      %cst_31 = arith.constant -1.000000e+30 : f32
      %46 = vector.broadcast %cst_31 : f32 to vector<1x128xf32>
      %c0_32 = arith.constant 0 : index
      %c0_33 = arith.constant 0 : index
      %47 = vector.load %arg10[%c0_32, %c0_33] : memref<1x128xf32, #tpu.memory_space<vmem>>, vector<1x128xf32>
      tpu.vector_store %arg10[%c0_32, %c0_33], %46 {strides = array<i32>} : memref<1x128xf32, #tpu.memory_space<vmem>>, vector<1x128xf32>,
      %cst_34 = arith.constant 1.000000e+30 : f32
      %48 = vector.broadcast %cst_34 : f32 to vector<1x128xf32>
      %c0_35 = arith.constant 0 : index
      %c0_36 = arith.constant 0 : index
      %49 = vector.load %arg11[%c0_35, %c0_36] : memref<1x128xf32, #tpu.memory_space<vmem>>, vector<1x128xf32>
      tpu.vector_store %arg11[%c0_35, %c0_36], %48 {strides = array<i32>} : memref<1x128xf32, #tpu.memory_space<vmem>>, vector<1x128xf32>,
    } else {
    }
    %c0 = arith.constant 0 : index
    %c0_1 = arith.constant 0 : index
    %3 = vector.load %arg2[%c0, %c0_1] : memref<128x32xf32, #tpu.memory_space<vmem>>, vector<128x32xf32>
    %4 = arith.truncf %3 : vector<128x32xf32> to vector<128x32xbf16>
    %c0_2 = arith.constant 0 : index
    %c0_3 = arith.constant 0 : index
    %5 = vector.load %arg3[%c0_2, %c0_3] : memref<128x32xf32, #tpu.memory_space<vmem>>, vector<128x32xf32>
    %6 = arith.truncf %5 : vector<128x32xf32> to vector<128x32xbf16>
    %cst = arith.constant dense<0.000000e+00> : vector<128x128xf32>
    %7 = tpu.matmul %4, %6, %cst {dimension_numbers = #tpu.dot_dimension_numbers<[1], [1], [0], [0], [0, 0, 1, 0], [], []>} : vector<128x32xbf16>, vector<128x32xbf16>, vector<128x128xf32> -> vector<128x128xf32>
    %c0_4 = arith.constant 0 : index
    %c0_5 = arith.constant 0 : index
    %8 = vector.load %arg4[%c0_4, %c0_5] : memref<128x1xf32, #tpu.memory_space<vmem>>, vector<128x1xf32>
    %c0_6 = arith.constant 0 : index
    %c0_7 = arith.constant 0 : index
    %9 = vector.load %arg5[%c0_6, %c0_7] : memref<1x128xf32, #tpu.memory_space<vmem>>, vector<1x128xf32>
    %10 = vector.broadcast %8 : vector<128x1xf32> to vector<128x128xf32>
    %11 = vector.broadcast %9 : vector<1x128xf32> to vector<128x128xf32>
    %12 = arith.addf %10, %11 : vector<128x128xf32>
    %cst_8 = arith.constant 2.000000e+00 : f32
    %13 = vector.broadcast %cst_8 : f32 to vector<128x128xf32>
    %14 = arith.mulf %13, %7 : vector<128x128xf32>
    %15 = arith.subf %12, %14 : vector<128x128xf32>
    %c0_9 = arith.constant 0 : index
    %c0_10 = arith.constant 0 : index
    %16 = vector.load %arg6[%c0_9, %c0_10] : memref<128x1xi32, #tpu.memory_space<vmem>>, vector<128x1xi32>
    %c0_11 = arith.constant 0 : index
    %c0_12 = arith.constant 0 : index
    %17 = vector.load %arg7[%c0_11, %c0_12] : memref<1x128xi32, #tpu.memory_space<vmem>>, vector<1x128xi32>
    %18 = vector.broadcast %16 : vector<128x1xi32> to vector<128x128xi32>
    %19 = vector.broadcast %17 : vector<1x128xi32> to vector<128x128xi32>
    %20 = arith.cmpi eq, %18, %19 : vector<128x128xi32>
    %c0_13 = arith.constant 0 : index
    %c0_14 = arith.constant 0 : index
    %21 = vector.load %arg8[%c0_13, %c0_14] : memref<128x1xf32, #tpu.memory_space<vmem>>, vector<128x1xf32>
    %cst_15 = arith.constant 5.000000e-01 : f32
    %22 = vector.broadcast %cst_15 : f32 to vector<128x1xf32>
    %23 = arith.cmpf ogt, %21, %22 : vector<128x1xf32>
    %24 = vector.broadcast %23 : vector<128x1xi1> to vector<128x128xi1>
    %25 = arith.andi %20, %24 : vector<128x128xi1>
    %cst_16 = arith.constant dense<true> : vector<128x128xi1>
    %26 = arith.xori %20, %cst_16 : vector<128x128xi1>
    %27 = vector.broadcast %23 : vector<128x1xi1> to vector<128x128xi1>
    %28 = arith.andi %26, %27 : vector<128x128xi1>
    %c0_17 = arith.constant 0 : index
    %c0_18 = arith.constant 0 : index
    %29 = vector.load %arg10[%c0_17, %c0_18] : memref<1x128xf32, #tpu.memory_space<vmem>>, vector<1x128xf32>
    %cst_19 = arith.constant -1.000000e+30 : f32
    %30 = vector.broadcast %cst_19 : f32 to vector<128x128xf32>
    %31 = arith.select %25, %15, %30 : vector<128x128xi1>, vector<128x128xf32>
    %cst_20 = arith.constant dense<0xFF800000> : vector<128xf32>
    %32 = vector.multi_reduction <maximumf>, %31, %cst_20 [0] : vector<128x128xf32> to vector<128xf32>
    %33 = vector.shape_cast %32 : vector<128xf32> to vector<1x128xf32>
    %34 = arith.maximumf %29, %33 : vector<1x128xf32>
    %c0_21 = arith.constant 0 : index
    %c0_22 = arith.constant 0 : index
    %35 = vector.load %arg10[%c0_21, %c0_22] : memref<1x128xf32, #tpu.memory_space<vmem>>, vector<1x128xf32>
    tpu.vector_store %arg10[%c0_21, %c0_22], %34 {strides = array<i32>} : memref<1x128xf32, #tpu.memory_space<vmem>>, vector<1x128xf32>,
    %c0_23 = arith.constant 0 : index
    %c0_24 = arith.constant 0 : index
    %36 = vector.load %arg11[%c0_23, %c0_24] : memref<1x128xf32, #tpu.memory_space<vmem>>, vector<1x128xf32>
    %cst_25 = arith.constant 1.000000e+30 : f32
    %37 = vector.broadcast %cst_25 : f32 to vector<128x128xf32>
    %38 = arith.select %28, %15, %37 : vector<128x128xi1>, vector<128x128xf32>
    %cst_26 = arith.constant dense<0x7F800000> : vector<128xf32>
    %39 = vector.multi_reduction <minimumf>, %38, %cst_26 [0] : vector<128x128xf32> to vector<128xf32>
    %40 = vector.shape_cast %39 : vector<128xf32> to vector<1x128xf32>
    %41 = arith.minimumf %36, %40 : vector<1x128xf32>
    %c0_27 = arith.constant 0 : index
    %c0_28 = arith.constant 0 : index
    %42 = vector.load %arg11[%c0_27, %c0_28] : memref<1x128xf32, #tpu.memory_space<vmem>>, vector<1x128xf32>
    tpu.vector_store %arg11[%c0_27, %c0_28], %41 {strides = array<i32>} : memref<1x128xf32, #tpu.memory_space<vmem>>, vector<1x128xf32>,
    %c0_i32_29 = arith.constant 0 : i32
    %43 = arith.cmpi eq, %arg1, %c0_i32_29 : i32
    %44 = arith.extui %43 : i1 to i32
    %c0_i32_30 = arith.constant 0 : i32
    %45 = arith.cmpi ne, %44, %c0_i32_30 : i32
    scf.if %45 {
      %c0_31 = arith.constant 0 : index
      %c0_32 = arith.constant 0 : index
      %46 = vector.load %arg10[%c0_31, %c0_32] : memref<1x128xf32, #tpu.memory_space<vmem>>, vector<1x128xf32>
      %cst_33 = arith.constant 9.99999996E-13 : f32
      %47 = vector.broadcast %cst_33 : f32 to vector<1x128xf32>
      %48 = arith.maximumf %46, %47 : vector<1x128xf32>
      %49 = math.sqrt %48 : vector<1x128xf32>
      %c0_34 = arith.constant 0 : index
      %c0_35 = arith.constant 0 : index
      %50 = vector.load %arg11[%c0_34, %c0_35] : memref<1x128xf32, #tpu.memory_space<vmem>>, vector<1x128xf32>
      %cst_36 = arith.constant 9.99999996E-13 : f32
      %51 = vector.broadcast %cst_36 : f32 to vector<1x128xf32>
      %52 = arith.maximumf %50, %51 : vector<1x128xf32>
      %53 = math.sqrt %52 : vector<1x128xf32>
      %54 = arith.subf %49, %53 : vector<1x128xf32>
      %cst_37 = arith.constant 3.000000e-01 : f32
      %55 = vector.broadcast %cst_37 : f32 to vector<1x128xf32>
      %56 = arith.addf %54, %55 : vector<1x128xf32>
      %cst_38 = arith.constant 0.000000e+00 : f32
      %57 = vector.broadcast %cst_38 : f32 to vector<1x128xf32>
      %58 = arith.maximumf %56, %57 : vector<1x128xf32>
      %59 = vector.shape_cast %58 : vector<1x128xf32> to vector<1x1x128xf32>
      %c0_39 = arith.constant 0 : index
      %c0_40 = arith.constant 0 : index
      %c0_41 = arith.constant 0 : index
      %60 = vector.load %arg9[%c0_39, %c0_40, %c0_41] : memref<1x1x128xf32, #tpu.memory_space<vmem>>, vector<1x1x128xf32>
      tpu.vector_store %arg9[%c0_39, %c0_40, %c0_41], %59 {strides = array<i32>} : memref<1x1x128xf32, #tpu.memory_space<vmem>>, vector<1x1x128xf32>,
    } else {
    }
    return
  }
  func.func @transform_0(%arg0: i32, %arg1: i32) -> (i32, i32) {
    %c0_i32 = arith.constant 0 : i32
    %c0_i32_0 = arith.constant 0 : i32
    return %arg1, %c0_i32 : i32, i32
  }
  func.func @transform_1(%arg0: i32, %arg1: i32) -> (i32, i32) {
    %c0_i32 = arith.constant 0 : i32
    %c0_i32_0 = arith.constant 0 : i32
    return %arg0, %c0_i32 : i32, i32
  }
  func.func @transform_2(%arg0: i32, %arg1: i32) -> (i32, i32) {
    %c0_i32 = arith.constant 0 : i32
    %c0_i32_0 = arith.constant 0 : i32
    return %arg1, %c0_i32 : i32, i32
  }
  func.func @transform_3(%arg0: i32, %arg1: i32) -> (i32, i32) {
    %c0_i32 = arith.constant 0 : i32
    %c0_i32_0 = arith.constant 0 : i32
    return %c0_i32, %arg0 : i32, i32
  }
  func.func @transform_4(%arg0: i32, %arg1: i32) -> (i32, i32) {
    %c0_i32 = arith.constant 0 : i32
    %c0_i32_0 = arith.constant 0 : i32
    return %arg1, %c0_i32 : i32, i32
  }
  func.func @transform_5(%arg0: i32, %arg1: i32) -> (i32, i32) {
    %c0_i32 = arith.constant 0 : i32
    %c0_i32_0 = arith.constant 0 : i32
    return %c0_i32, %arg0 : i32, i32
  }
  func.func @transform_6(%arg0: i32, %arg1: i32) -> (i32, i32) {
    %c0_i32 = arith.constant 0 : i32
    %c0_i32_0 = arith.constant 0 : i32
    return %arg1, %c0_i32 : i32, i32
  }
  func.func @transform_7(%arg0: i32, %arg1: i32) -> (i32, i32, i32) {
    %c0_i32 = arith.constant 0 : i32
    %c0_i32_0 = arith.constant 0 : i32
    %c0_i32_1 = arith.constant 0 : i32
    return %arg0, %c0_i32, %c0_i32_0 : i32, i32, i32
  }
}

</mosaic_0001>

<llo_original>
// kernel: tpu_custom_call.1
$region0: #{tpu_custom_call.1}
  #allocation0 [shape = 'u32[]', space=smem, size = 0x4, offset = 0x4, fixed_abs, tag = 'smem constant byte address 0x4 - core index']
  #allocation1 [shape = 'u32[72,128]{1,0:T(1,128)}', space=vmem, size = 0x9000, scoped, tag = 'internal scratch']
  #allocation2 [shape = 'f32[1,128]{1,0:T(1,128)}', space=vmem, size = 0x200, scoped, tag = 'scratch operand']
  #allocation3 [shape = 'f32[1,128]{1,0:T(1,128)}', space=vmem, size = 0x200, scoped, tag = 'scratch operand']
  %s0 = inlined_call_operand.vmem [shape: f32[128,32], index: 0, kind: input, shape index: {}]
  %s1 = inlined_call_operand.vmem [shape: f32[128,32], index: 1, kind: input, shape index: {}]
  %s2 = inlined_call_operand.vmem [shape: f32[128,1], index: 2, kind: input, shape index: {}]
  %s3 = inlined_call_operand.vmem [shape: f32[1,128], index: 3, kind: input, shape index: {}]
  %s4 = inlined_call_operand.vmem [shape: s32[128,1], index: 4, kind: input, shape index: {}]
  %s5 = inlined_call_operand.vmem [shape: s32[1,128], index: 5, kind: input, shape index: {}]
  %s6 = inlined_call_operand.vmem [shape: f32[128,1], index: 6, kind: input, shape index: {}]
  %s7 = inlined_call_operand.hbm [shape: f32[1,1,128], index: 7, kind: output, shape index: {}]
  %s8 = sld [smem:[#allocation0]]
  $region46: #{tpu_custom_call.1} parent=0
    _
  %s10 = ssub.s32 1, %s8
  %s11 = scalar_select 0, %s10, %s8
  $region1: #{tpu_custom_call.1} parent=0
    #allocation4 [shape = 'u8[512]{0}', space=vmem, size = 0x400, scoped, tag = 'output window, operand 0, single buffered']
    #allocation5 [shape = 's32[1]{0}', space=sflag, size = 0x4, scoped, tag = 'scoped memory for tpu_custom_call.1']
    %12 = vsyncpa [#allocation5], 0
    // Predicated region
    $region2: #{tpu_custom_call.1} parent=1 // pred_check
      _
    $region3: #{tpu_custom_call.1} parent=1 // pred_check_branch
      %14 = sbr.rel (0) target = $region5
    $region4: #{tpu_custom_call.1} parent=1 // pred_region
      _
    $region5: #{tpu_custom_call.1} parent=1 // pred_fallthru
      _
    // Predicated region
    $region6: #{tpu_custom_call.1} parent=1 // pred_check
      _
    $region7: #{tpu_custom_call.1} parent=1 // pred_check_branch
      %16 = sbr.rel (0) target = $region9
    $region8: #{tpu_custom_call.1} parent=1 // pred_region
      _
    $region9: #{tpu_custom_call.1} parent=1 // pred_fallthru
      _
    // Predicated region
    $region10: #{tpu_custom_call.1} parent=1 // pred_check
      _
    $region11: #{tpu_custom_call.1} parent=1 // pred_check_branch
      %18 = sbr.rel (0) target = $region13
    $region12: #{tpu_custom_call.1} parent=1 // pred_region
      _
    $region13: #{tpu_custom_call.1} parent=1 // pred_fallthru
      _
    // Predicated region
    $region14: #{tpu_custom_call.1} parent=1 // pred_check
      _
    $region15: #{tpu_custom_call.1} parent=1 // pred_check_branch
      %20 = sbr.rel (0) target = $region17
    $region16: #{tpu_custom_call.1} parent=1 // pred_region
      _
    $region17: #{tpu_custom_call.1} parent=1 // pred_fallthru
      _
    // Predicated region
    $region18: #{tpu_custom_call.1} parent=1 // pred_check
      _
    $region19: #{tpu_custom_call.1} parent=1 // pred_check_branch
      %22 = sbr.rel (0) target = $region21
    $region20: #{tpu_custom_call.1} parent=1 // pred_region
      _
    $region21: #{tpu_custom_call.1} parent=1 // pred_fallthru
      _
    // Predicated region
    $region22: #{tpu_custom_call.1} parent=1 // pred_check
      _
    $region23: #{tpu_custom_call.1} parent=1 // pred_check_branch
      %24 = sbr.rel (0) target = $region25
    $region24: #{tpu_custom_call.1} parent=1 // pred_region
      _
    $region25: #{tpu_custom_call.1} parent=1 // pred_fallthru
      _
    // Predicated region
    $region26: #{tpu_custom_call.1} parent=1 // pred_check
      _
    $region27: #{tpu_custom_call.1} parent=1 // pred_check_branch
      %26 = sbr.rel (0) target = $region29
    $region28: #{tpu_custom_call.1} parent=1 // pred_region
      _
    $region29: #{tpu_custom_call.1} parent=1 // pred_fallthru
      _
    %p27 = scmp.eq.s32.totalorder 0, 0
    // Predicated region
    $region30: #{tpu_custom_call.1} parent=1 // pred_check
      %p28 = pneg %p27
    $region31: #{tpu_custom_call.1} parent=1 // pred_check_branch
      %30 = sbr.rel (%p28) target = $region33
    $region32: #{tpu_custom_call.1} parent=1 // pred_region
      %31 = vst [vmem:[#allocation2] sm:$0x1] -1e+30
      %32 = vst [vmem:[#allocation3] sm:$0x1] 1e+30
    $region33: #{tpu_custom_call.1} parent=1 // pred_fallthru
      _
    %v33 = vld [vmem:[%s0] sm:$0xff]
    %v34 = vld [vmem:[%s0 + $0x8] sm:$0xff]
    %v35 = vld [vmem:[%s0 + $0x10] sm:$0xff]
    %v36 = vld [vmem:[%s0 + $0x18] sm:$0xff]
    %v37 = vld [vmem:[%s0 + $0x20] sm:$0xff]
    %v38 = vld [vmem:[%s0 + $0x28] sm:$0xff]
    %v39 = vld [vmem:[%s0 + $0x30] sm:$0xff]
    %v40 = vld [vmem:[%s0 + $0x38] sm:$0xff]
    %v41 = vld [vmem:[%s0 + $0x40] sm:$0xff]
    %v42 = vld [vmem:[%s0 + $0x48] sm:$0xff]
    %v43 = vld [vmem:[%s0 + $0x50] sm:$0xff]
    %v44 = vld [vmem:[%s0 + $0x58] sm:$0xff]
    %v45 = vld [vmem:[%s0 + $0x60] sm:$0xff]
    %v46 = vld [vmem:[%s0 + $0x68] sm:$0xff]
    %v47 = vld [vmem:[%s0 + $0x70] sm:$0xff]
    %v48 = vld [vmem:[%s0 + $0x78] sm:$0xff]
    %v49 = vpack.c.bf16 %v34, %v33
    %v50 = vpack.c.bf16 %v36, %v35
    %v51 = vpack.c.bf16 %v38, %v37
    %v52 = vpack.c.bf16 %v40, %v39
    %v53 = vpack.c.bf16 %v42, %v41
    %v54 = vpack.c.bf16 %v44, %v43
    %v55 = vpack.c.bf16 %v46, %v45
    %v56 = vpack.c.bf16 %v48, %v47
    %v57 = vld [vmem:[%s1] sm:$0xff]
    %v58 = vld [vmem:[%s1 + $0x8] sm:$0xff]
    %v59 = vld [vmem:[%s1 + $0x10] sm:$0xff]
    %v60 = vld [vmem:[%s1 + $0x18] sm:$0xff]
    %v61 = vld [vmem:[%s1 + $0x20] sm:$0xff]
    %v62 = vld [vmem:[%s1 + $0x28] sm:$0xff]
    %v63 = vld [vmem:[%s1 + $0x30] sm:$0xff]
    %v64 = vld [vmem:[%s1 + $0x38] sm:$0xff]
    %v65 = vld [vmem:[%s1 + $0x40] sm:$0xff]
    %v66 = vld [vmem:[%s1 + $0x48] sm:$0xff]
    %v67 = vld [vmem:[%s1 + $0x50] sm:$0xff]
    %v68 = vld [vmem:[%s1 + $0x58] sm:$0xff]
    %v69 = vld [vmem:[%s1 + $0x60] sm:$0xff]
    %v70 = vld [vmem:[%s1 + $0x68] sm:$0xff]
    %v71 = vld [vmem:[%s1 + $0x70] sm:$0xff]
    %v72 = vld [vmem:[%s1 + $0x78] sm:$0xff]
    %v73 = vpack.c.bf16 %v58, %v57
    %v74 = vpack.c.bf16 %v60, %v59
    %v75 = vpack.c.bf16 %v62, %v61
    %v76 = vpack.c.bf16 %v64, %v63
    %v77 = vpack.c.bf16 %v66, %v65
    %v78 = vpack.c.bf16 %v68, %v67
    %v79 = vpack.c.bf16 %v70, %v69
    %v80 = vpack.c.bf16 %v72, %v71
    %vm81 = vcmask 261120
    %v83 = vsel %vm81, %v49, 0
    %v86 = vsel %vm81, %v50, 0
    %v89 = vsel %vm81, %v51, 0
    %v92 = vsel %vm81, %v52, 0
    %v95 = vsel %vm81, %v53, 0
    %v98 = vsel %vm81, %v54, 0
    %v101 = vsel %vm81, %v55, 0
    %v104 = vsel %vm81, %v56, 0
    %v107 = vsel %vm81, %v73, 0
    %v110 = vsel %vm81, %v74, 0
    %v113 = vsel %vm81, %v75, 0
    %v116 = vsel %vm81, %v76, 0
    %v119 = vsel %vm81, %v77, 0
    %v122 = vsel %vm81, %v78, 0
    %v125 = vsel %vm81, %v79, 0
    %v128 = vsel %vm81, %v80, 0
    %130 = vmatpush.bf16.xpose.msra.mxu0 %v128
    %131 = vmatpush.bf16.xpose.msra.mxu0 %v125
    %132 = vmatpush.bf16.xpose.msra.mxu0 %v122
    %133 = vmatpush.bf16.xpose.msra.mxu0 %v119
    %134 = vmatpush.bf16.xpose.msra.mxu0 %v116
    %135 = vmatpush.bf16.xpose.msra.mxu0 %v113
    %136 = vmatpush.bf16.xpose.msra.mxu0 %v110
    %137 = vmatpush.bf16.xpose.msra.mxu0 %v107
    %138 = vmatmul.bf16.gmra.mxu0 %v83
    %v139 = vpop.f32.mrf.mxu0
    %v140 = vadd.f32 0.0, %v139
    %v141 = vpop.f32.mrf.mxu0
    %v142 = vadd.f32 0.0, %v141
    %143 = vmatmul.bf16.gmra.mxu0 %v86
    %v144 = vpop.f32.mrf.mxu0
    %v145 = vadd.f32 0.0, %v144
    %v146 = vpop.f32.mrf.mxu0
    %v147 = vadd.f32 0.0, %v146
    %148 = vmatmul.bf16.gmra.mxu0 %v89
    %v149 = vpop.f32.mrf.mxu0
    %v150 = vadd.f32 0.0, %v149
    %v151 = vpop.f32.mrf.mxu0
    %v152 = vadd.f32 0.0, %v151
    %153 = vmatmul.bf16.gmra.mxu0 %v92
    %v154 = vpop.f32.mrf.mxu0
    %v155 = vadd.f32 0.0, %v154
    %v156 = vpop.f32.mrf.mxu0
    %v157 = vadd.f32 0.0, %v156
    %158 = vmatmul.bf16.gmra.mxu0 %v95
    %v159 = vpop.f32.mrf.mxu0
    %v160 = vadd.f32 0.0, %v159
    %v161 = vpop.f32.mrf.mxu0
    %v162 = vadd.f32 0.0, %v161
    %163 = vmatmul.bf16.gmra.mxu0 %v98
    %v164 = vpop.f32.mrf.mxu0
    %v165 = vadd.f32 0.0, %v164
    %v166 = vpop.f32.mrf.mxu0
    %v167 = vadd.f32 0.0, %v166
    %168 = vmatmul.bf16.gmra.mxu0 %v101
    %v169 = vpop.f32.mrf.mxu0
    %v170 = vadd.f32 0.0, %v169
    %v171 = vpop.f32.mrf.mxu0
    %v172 = vadd.f32 0.0, %v171
    %173 = vmatmul.bf16.gmra.mxu0 %v104
    %v174 = vpop.f32.mrf.mxu0
    %v175 = vadd.f32 0.0, %v174
    %v176 = vpop.f32.mrf.mxu0
    %v177 = vadd.f32 0.0, %v176
    %178 = vdwg.mxu0
    %v179 = vld [vmem:[%s2] sm:$0xff]
    %v180 = vld [vmem:[%s2 + $0x8] sm:$0xff]
    %v181 = vld [vmem:[%s2 + $0x10] sm:$0xff]
    %v182 = vld [vmem:[%s2 + $0x18] sm:$0xff]
    %v183 = vld [vmem:[%s2 + $0x20] sm:$0xff]
    %v184 = vld [vmem:[%s2 + $0x28] sm:$0xff]
    %v185 = vld [vmem:[%s2 + $0x30] sm:$0xff]
    %v186 = vld [vmem:[%s2 + $0x38] sm:$0xff]
    %v187 = vld [vmem:[%s2 + $0x40] sm:$0xff]
    %v188 = vld [vmem:[%s2 + $0x48] sm:$0xff]
    %v189 = vld [vmem:[%s2 + $0x50] sm:$0xff]
    %v190 = vld [vmem:[%s2 + $0x58] sm:$0xff]
    %v191 = vld [vmem:[%s2 + $0x60] sm:$0xff]
    %v192 = vld [vmem:[%s2 + $0x68] sm:$0xff]
    %v193 = vld [vmem:[%s2 + $0x70] sm:$0xff]
    %v194 = vld [vmem:[%s2 + $0x78] sm:$0xff]
    %v195 = vld [vmem:[%s3] sm:$0x1]
    %197 = vset.pattern.permute.xlu0 0
    %198 = vperm.xlu0 %197, %v179
    %v199 = vpop.permute.xlu0 %198
    %202 = vset.pattern.permute.xlu0 0
    %203 = vperm.xlu0 %202, %v180
    %v204 = vpop.permute.xlu0 %203
    %207 = vset.pattern.permute.xlu0 0
    %208 = vperm.xlu0 %207, %v181
    %v209 = vpop.permute.xlu0 %208
    %212 = vset.pattern.permute.xlu0 0
    %213 = vperm.xlu0 %212, %v182
    %v214 = vpop.permute.xlu0 %213
    %217 = vset.pattern.permute.xlu0 0
    %218 = vperm.xlu0 %217, %v183
    %v219 = vpop.permute.xlu0 %218
    %222 = vset.pattern.permute.xlu0 0
    %223 = vperm.xlu0 %222, %v184
    %v224 = vpop.permute.xlu0 %223
    %227 = vset.pattern.permute.xlu0 0
    %228 = vperm.xlu0 %227, %v185
    %v229 = vpop.permute.xlu0 %228
    %232 = vset.pattern.permute.xlu0 0
    %233 = vperm.xlu0 %232, %v186
    %v234 = vpop.permute.xlu0 %233
    %237 = vset.pattern.permute.xlu0 0
    %238 = vperm.xlu0 %237, %v187
    %v239 = vpop.permute.xlu0 %238
    %242 = vset.pattern.permute.xlu0 0
    %243 = vperm.xlu0 %242, %v188
    %v244 = vpop.permute.xlu0 %243
    %247 = vset.pattern.permute.xlu0 0
    %248 = vperm.xlu0 %247, %v189
    %v249 = vpop.permute.xlu0 %248
    %252 = vset.pattern.permute.xlu0 0
    %253 = vperm.xlu0 %252, %v190
    %v254 = vpop.permute.xlu0 %253
    %257 = vset.pattern.permute.xlu0 0
    %258 = vperm.xlu0 %257, %v191
    %v259 = vpop.permute.xlu0 %258
    %262 = vset.pattern.permute.xlu0 0
    %263 = vperm.xlu0 %262, %v192
    %v264 = vpop.permute.xlu0 %263
    %267 = vset.pattern.permute.xlu0 0
    %268 = vperm.xlu0 %267, %v193
    %v269 = vpop.permute.xlu0 %268
    %272 = vset.pattern.permute.xlu0 0
    %273 = vperm.xlu0 %272, %v194
    %v274 = vpop.permute.xlu0 %273
    %v277 = vperm.slane %v195, 0
    %v279 = vadd.f32 %v199, %v277
    %v280 = vadd.f32 %v204, %v277
    %v281 = vadd.f32 %v209, %v277
    %v282 = vadd.f32 %v214, %v277
    %v283 = vadd.f32 %v219, %v277
    %v284 = vadd.f32 %v224, %v277
    %v285 = vadd.f32 %v229, %v277
    %v286 = vadd.f32 %v234, %v277
    %v287 = vadd.f32 %v239, %v277
    %v288 = vadd.f32 %v244, %v277
    %v289 = vadd.f32 %v249, %v277
    %v290 = vadd.f32 %v254, %v277
    %v291 = vadd.f32 %v259, %v277
    %v292 = vadd.f32 %v264, %v277
    %v293 = vadd.f32 %v269, %v277
    %v294 = vadd.f32 %v274, %v277
    %v295 = vmul.f32 %v140, 2.0
    %v296 = vmul.f32 %v142, 2.0
    %v297 = vmul.f32 %v145, 2.0
    %v298 = vmul.f32 %v147, 2.0
    %v299 = vmul.f32 %v150, 2.0
    %v300 = vmul.f32 %v152, 2.0
    %v301 = vmul.f32 %v155, 2.0
    %v302 = vmul.f32 %v157, 2.0
    %v303 = vmul.f32 %v160, 2.0
    %v304 = vmul.f32 %v162, 2.0
    %v305 = vmul.f32 %v165, 2.0
    %v306 = vmul.f32 %v167, 2.0
    %v307 = vmul.f32 %v170, 2.0
    %v308 = vmul.f32 %v172, 2.0
    %v309 = vmul.f32 %v175, 2.0
    %v310 = vmul.f32 %v177, 2.0
    %v311 = vsub.f32 %v279, %v295
    %v312 = vsub.f32 %v280, %v296
    %v313 = vsub.f32 %v281, %v297
    %v314 = vsub.f32 %v282, %v298
    %v315 = vsub.f32 %v283, %v299
    %v316 = vsub.f32 %v284, %v300
    %v317 = vsub.f32 %v285, %v301
    %v318 = vsub.f32 %v286, %v302
    %v319 = vsub.f32 %v287, %v303
    %v320 = vsub.f32 %v288, %v304
    %v321 = vsub.f32 %v289, %v305
    %v322 = vsub.f32 %v290, %v306
    %v323 = vsub.f32 %v291, %v307
    %v324 = vsub.f32 %v292, %v308
    %v325 = vsub.f32 %v293, %v309
    %v326 = vsub.f32 %v294, %v310
    %v327 = vld [vmem:[%s4] sm:$0xff]
    %v328 = vld [vmem:[%s4 + $0x8] sm:$0xff]
    %v329 = vld [vmem:[%s4 + $0x10] sm:$0xff]
    %v330 = vld [vmem:[%s4 + $0x18] sm:$0xff]
    %v331 = vld [vmem:[%s4 + $0x20] sm:$0xff]
    %v332 = vld [vmem:[%s4 + $0x28] sm:$0xff]
    %v333 = vld [vmem:[%s4 + $0x30] sm:$0xff]
    %v334 = vld [vmem:[%s4 + $0x38] sm:$0xff]
    %v335 = vld [vmem:[%s4 + $0x40] sm:$0xff]
    %v336 = vld [vmem:[%s4 + $0x48] sm:$0xff]
    %v337 = vld [vmem:[%s4 + $0x50] sm:$0xff]
    %v338 = vld [vmem:[%s4 + $0x58] sm:$0xff]
    %v339 = vld [vmem:[%s4 + $0x60] sm:$0xff]
    %v340 = vld [vmem:[%s4 + $0x68] sm:$0xff]
    %v341 = vld [vmem:[%s4 + $0x70] sm:$0xff]
    %v342 = vld [vmem:[%s4 + $0x78] sm:$0xff]
    %v343 = vld [vmem:[%s5] sm:$0x1]
    %344 = vset.pattern.permute.xlu0 0
    %345 = vperm.xlu0 %344, %v327
    %v346 = vpop.permute.xlu0 %345
    %347 = vset.pattern.permute.xlu0 0
    %348 = vperm.xlu0 %347, %v328
    %v349 = vpop.permute.xlu0 %348
    %350 = vset.pattern.permute.xlu0 0
    %351 = vperm.xlu0 %350, %v329
    %v352 = vpop.permute.xlu0 %351
    %353 = vset.pattern.permute.xlu0 0
    %354 = vperm.xlu0 %353, %v330
    %v355 = vpop.permute.xlu0 %354
    %356 = vset.pattern.permute.xlu0 0
    %357 = vperm.xlu0 %356, %v331
    %v358 = vpop.permute.xlu0 %357
    %359 = vset.pattern.permute.xlu0 0
    %360 = vperm.xlu0 %359, %v332
    %v361 = vpop.permute.xlu0 %360
    %362 = vset.pattern.permute.xlu0 0
    %363 = vperm.xlu0 %362, %v333
    %v364 = vpop.permute.xlu0 %363
    %365 = vset.pattern.permute.xlu0 0
    %366 = vperm.xlu0 %365, %v334
    %v367 = vpop.permute.xlu0 %366
    %368 = vset.pattern.permute.xlu0 0
    %369 = vperm.xlu0 %368, %v335
    %v370 = vpop.permute.xlu0 %369
    %371 = vset.pattern.permute.xlu0 0
    %372 = vperm.xlu0 %371, %v336
    %v373 = vpop.permute.xlu0 %372
    %374 = vset.pattern.permute.xlu0 0
    %375 = vperm.xlu0 %374, %v337
    %v376 = vpop.permute.xlu0 %375
    %377 = vset.pattern.permute.xlu0 0
    %378 = vperm.xlu0 %377, %v338
    %v379 = vpop.permute.xlu0 %378
    %380 = vset.pattern.permute.xlu0 0
    %381 = vperm.xlu0 %380, %v339
    %v382 = vpop.permute.xlu0 %381
    %383 = vset.pattern.permute.xlu0 0
    %384 = vperm.xlu0 %383, %v340
    %v385 = vpop.permute.xlu0 %384
    %386 = vset.pattern.permute.xlu0 0
    %387 = vperm.xlu0 %386, %v341
    %v388 = vpop.permute.xlu0 %387
    %389 = vset.pattern.permute.xlu0 0
    %390 = vperm.xlu0 %389, %v342
    %v391 = vpop.permute.xlu0 %390
    %v392 = vperm.slane %v343, 0
    %vm393 = vcmp.eq.s32.totalorder %v346, %v392
    %vm394 = vcmp.eq.s32.totalorder %v349, %v392
    %vm395 = vcmp.eq.s32.totalorder %v352, %v392
    %vm396 = vcmp.eq.s32.totalorder %v355, %v392
    %vm397 = vcmp.eq.s32.totalorder %v358, %v392
    %vm398 = vcmp.eq.s32.totalorder %v361, %v392
    %vm399 = vcmp.eq.s32.totalorder %v364, %v392
    %vm400 = vcmp.eq.s32.totalorder %v367, %v392
    %vm401 = vcmp.eq.s32.totalorder %v370, %v392
    %vm402 = vcmp.eq.s32.totalorder %v373, %v392
    %vm403 = vcmp.eq.s32.totalorder %v376, %v392
    %vm404 = vcmp.eq.s32.totalorder %v379, %v392
    %vm405 = vcmp.eq.s32.totalorder %v382, %v392
    %vm406 = vcmp.eq.s32.totalorder %v385, %v392
    %vm407 = vcmp.eq.s32.totalorder %v388, %v392
    %vm408 = vcmp.eq.s32.totalorder %v391, %v392
    %v409 = vld [vmem:[%s6] sm:$0xff]
    %v410 = vld [vmem:[%s6 + $0x8] sm:$0xff]
    %v411 = vld [vmem:[%s6 + $0x10] sm:$0xff]
    %v412 = vld [vmem:[%s6 + $0x18] sm:$0xff]
    %v413 = vld [vmem:[%s6 + $0x20] sm:$0xff]
    %v414 = vld [vmem:[%s6 + $0x28] sm:$0xff]
    %v415 = vld [vmem:[%s6 + $0x30] sm:$0xff]
    %v416 = vld [vmem:[%s6 + $0x38] sm:$0xff]
    %v417 = vld [vmem:[%s6 + $0x40] sm:$0xff]
    %v418 = vld [vmem:[%s6 + $0x48] sm:$0xff]
    %v419 = vld [vmem:[%s6 + $0x50] sm:$0xff]
    %v420 = vld [vmem:[%s6 + $0x58] sm:$0xff]
    %v421 = vld [vmem:[%s6 + $0x60] sm:$0xff]
    %v422 = vld [vmem:[%s6 + $0x68] sm:$0xff]
    %v423 = vld [vmem:[%s6 + $0x70] sm:$0xff]
    %v424 = vld [vmem:[%s6 + $0x78] sm:$0xff]
    %vm425 = vcmp.gt.f32.partialorder %v409, 0.5
    %vm426 = vcmp.gt.f32.partialorder %v410, 0.5
    %vm427 = vcmp.gt.f32.partialorder %v411, 0.5
    %vm428 = vcmp.gt.f32.partialorder %v412, 0.5
    %vm429 = vcmp.gt.f32.partialorder %v413, 0.5
    %vm430 = vcmp.gt.f32.partialorder %v414, 0.5
    %vm431 = vcmp.gt.f32.partialorder %v415, 0.5
    %vm432 = vcmp.gt.f32.partialorder %v416, 0.5
    %vm433 = vcmp.gt.f32.partialorder %v417, 0.5
    %vm434 = vcmp.gt.f32.partialorder %v418, 0.5
    %vm435 = vcmp.gt.f32.partialorder %v419, 0.5
    %vm436 = vcmp.gt.f32.partialorder %v420, 0.5
    %vm437 = vcmp.gt.f32.partialorder %v421, 0.5
    %vm438 = vcmp.gt.f32.partialorder %v422, 0.5
    %vm439 = vcmp.gt.f32.partialorder %v423, 0.5
    %vm440 = vcmp.gt.f32.partialorder %v424, 0.5
    %v441 = vsel %vm425, 1, 0
    %v442 = vsel %vm426, 1, 0
    %v443 = vsel %vm427, 1, 0
    %v444 = vsel %vm428, 1, 0
    %v445 = vsel %vm429, 1, 0
    %v446 = vsel %vm430, 1, 0
    %v447 = vsel %vm431, 1, 0
    %v448 = vsel %vm432, 1, 0
    %v449 = vsel %vm433, 1, 0
    %v450 = vsel %vm434, 1, 0
    %v451 = vsel %vm435, 1, 0
    %v452 = vsel %vm436, 1, 0
    %v453 = vsel %vm437, 1, 0
    %v454 = vsel %vm438, 1, 0
    %v455 = vsel %vm439, 1, 0
    %v456 = vsel %vm440, 1, 0
    %457 = vset.pattern.permute.xlu0 0
    %458 = vperm.xlu0 %457, %v441
    %v459 = vpop.permute.xlu0 %458
    %460 = vset.pattern.permute.xlu0 0
    %461 = vperm.xlu0 %460, %v442
    %v462 = vpop.permute.xlu0 %461
    %463 = vset.pattern.permute.xlu0 0
    %464 = vperm.xlu0 %463, %v443
    %v465 = vpop.permute.xlu0 %464
    %466 = vset.pattern.permute.xlu0 0
    %467 = vperm.xlu0 %466, %v444
    %v468 = vpop.permute.xlu0 %467
    %469 = vset.pattern.permute.xlu0 0
    %470 = vperm.xlu0 %469, %v445
    %v471 = vpop.permute.xlu0 %470
    %472 = vset.pattern.permute.xlu0 0
    %473 = vperm.xlu0 %472, %v446
    %v474 = vpop.permute.xlu0 %473
    %475 = vset.pattern.permute.xlu0 0
    %476 = vperm.xlu0 %475, %v447
    %v477 = vpop.permute.xlu0 %476
    %478 = vset.pattern.permute.xlu0 0
    %479 = vperm.xlu0 %478, %v448
    %v480 = vpop.permute.xlu0 %479
    %481 = vset.pattern.permute.xlu0 0
    %482 = vperm.xlu0 %481, %v449
    %v483 = vpop.permute.xlu0 %482
    %484 = vset.pattern.permute.xlu0 0
    %485 = vperm.xlu0 %484, %v450
    %v486 = vpop.permute.xlu0 %485
    %487 = vset.pattern.permute.xlu0 0
    %488 = vperm.xlu0 %487, %v451
    %v489 = vpop.permute.xlu0 %488
    %490 = vset.pattern.permute.xlu0 0
    %491 = vperm.xlu0 %490, %v452
    %v492 = vpop.permute.xlu0 %491
    %493 = vset.pattern.permute.xlu0 0
    %494 = vperm.xlu0 %493, %v453
    %v495 = vpop.permute.xlu0 %494
    %496 = vset.pattern.permute.xlu0 0
    %497 = vperm.xlu0 %496, %v454
    %v498 = vpop.permute.xlu0 %497
    %499 = vset.pattern.permute.xlu0 0
    %500 = vperm.xlu0 %499, %v455
    %v501 = vpop.permute.xlu0 %500
    %502 = vset.pattern.permute.xlu0 0
    %503 = vperm.xlu0 %502, %v456
    %v504 = vpop.permute.xlu0 %503
    %vm505 = vcmp.eq.s32.totalorder %v459, 1
    %vm506 = vcmp.eq.s32.totalorder %v462, 1
    %vm507 = vcmp.eq.s32.totalorder %v465, 1
    %vm508 = vcmp.eq.s32.totalorder %v468, 1
    %vm509 = vcmp.eq.s32.totalorder %v471, 1
    %vm510 = vcmp.eq.s32.totalorder %v474, 1
    %vm511 = vcmp.eq.s32.totalorder %v477, 1
    %vm512 = vcmp.eq.s32.totalorder %v480, 1
    %vm513 = vcmp.eq.s32.totalorder %v483, 1
    %vm514 = vcmp.eq.s32.totalorder %v486, 1
    %vm515 = vcmp.eq.s32.totalorder %v489, 1
    %vm516 = vcmp.eq.s32.totalorder %v492, 1
    %vm517 = vcmp.eq.s32.totalorder %v495, 1
    %vm518 = vcmp.eq.s32.totalorder %v498, 1
    %vm519 = vcmp.eq.s32.totalorder %v501, 1
    %vm520 = vcmp.eq.s32.totalorder %v504, 1
    %vm521 = vmand %vm393, %vm505
    %vm522 = vmand %vm394, %vm506
    %vm523 = vmand %vm395, %vm507
    %vm524 = vmand %vm396, %vm508
    %vm525 = vmand %vm397, %vm509
    %vm526 = vmand %vm398, %vm510
    %vm527 = vmand %vm399, %vm511
    %vm528 = vmand %vm400, %vm512
    %vm529 = vmand %vm401, %vm513
    %vm530 = vmand %vm402, %vm514
    %vm531 = vmand %vm403, %vm515
    %vm532 = vmand %vm404, %vm516
    %vm533 = vmand %vm405, %vm517
    %vm534 = vmand %vm406, %vm518
    %vm535 = vmand %vm407, %vm519
    %vm536 = vmand %vm408, %vm520
    %vm537 = vmxor %vm393, 1
    %vm538 = vmxor %vm394, 1
    %vm539 = vmxor %vm395, 1
    %vm540 = vmxor %vm396, 1
    %vm541 = vmxor %vm397, 1
    %vm542 = vmxor %vm398, 1
    %vm543 = vmxor %vm399, 1
    %vm544 = vmxor %vm400, 1
    %vm545 = vmxor %vm401, 1
    %vm546 = vmxor %vm402, 1
    %vm547 = vmxor %vm403, 1
    %vm548 = vmxor %vm404, 1
    %vm549 = vmxor %vm405, 1
    %vm550 = vmxor %vm406, 1
    %vm551 = vmxor %vm407, 1
    %vm552 = vmxor %vm408, 1
    %vm553 = vmand %vm537, %vm505
    %vm554 = vmand %vm538, %vm506
    %vm555 = vmand %vm539, %vm507
    %vm556 = vmand %vm540, %vm508
    %vm557 = vmand %vm541, %vm509
    %vm558 = vmand %vm542, %vm510
    %vm559 = vmand %vm543, %vm511
    %vm560 = vmand %vm544, %vm512
    %vm561 = vmand %vm545, %vm513
    %vm562 = vmand %vm546, %vm514
    %vm563 = vmand %vm547, %vm515
    %vm564 = vmand %vm548, %vm516
    %vm565 = vmand %vm549, %vm517
    %vm566 = vmand %vm550, %vm518
    %vm567 = vmand %vm551, %vm519
    %vm568 = vmand %vm552, %vm520
    %v569 = vld [vmem:[#allocation2] sm:$0x1]
    %v570 = vsel %vm521, %v311, -1e+30
    %v571 = vsel %vm522, %v312, -1e+30
    %v572 = vsel %vm523, %v313, -1e+30
    %v573 = vsel %vm524, %v314, -1e+30
    %v574 = vsel %vm525, %v315, -1e+30
    %v575 = vsel %vm526, %v316, -1e+30
    %v576 = vsel %vm527, %v317, -1e+30
    %v577 = vsel %vm528, %v318, -1e+30
    %v578 = vsel %vm529, %v319, -1e+30
    %v579 = vsel %vm530, %v320, -1e+30
    %v580 = vsel %vm531, %v321, -1e+30
    %v581 = vsel %vm532, %v322, -1e+30
    %v582 = vsel %vm533, %v323, -1e+30
    %v583 = vsel %vm534, %v324, -1e+30
    %v584 = vsel %vm535, %v325, -1e+30
    %v585 = vsel %vm536, %v326, -1e+30
    %v586 = vmax.f32 %v570, %v574
    %v587 = vmax.f32 %v571, %v575
    %v588 = vmax.f32 %v572, %v576
    %v589 = vmax.f32 %v573, %v577
    %v590 = vmax.f32 %v586, %v578
    %v591 = vmax.f32 %v587, %v579
    %v592 = vmax.f32 %v588, %v580
    %v593 = vmax.f32 %v589, %v581
    %v594 = vmax.f32 %v590, %v582
    %v595 = vmax.f32 %v591, %v583
    %v596 = vmax.f32 %v592, %v584
    %v597 = vmax.f32 %v593, %v585
    %v598 = vmax.f32 %v594, %v595
    %v599 = vmax.f32 %v596, %v597
    %v600 = vmax.f32 %v598, %v599
    %v601 = vrot.slane %v600, 4
    %v602 = vmax.f32 %v600, %v601
    %v603 = vrot.slane %v602, 2
    %v604 = vmax.f32 %v602, %v603
    %v605 = vrot.slane %v604, 1
    %v606 = vmax.f32 %v604, %v605
    %v607 = vmax.f32 %v569, %v606
    %608 = vst [vmem:[#allocation2] sm:$0x1] %v607
    %v609 = vld [vmem:[#allocation3] sm:$0x1]
    %v610 = vsel %vm553, %v311, 1e+30
    %v611 = vsel %vm554, %v312, 1e+30
    %v612 = vsel %vm555, %v313, 1e+30
    %v613 = vsel %vm556, %v314, 1e+30
    %v614 = vsel %vm557, %v315, 1e+30
    %v615 = vsel %vm558, %v316, 1e+30
    %v616 = vsel %vm559, %v317, 1e+30
    %v617 = vsel %vm560, %v318, 1e+30
    %v618 = vsel %vm561, %v319, 1e+30
    %v619 = vsel %vm562, %v320, 1e+30
    %v620 = vsel %vm563, %v321, 1e+30
    %v621 = vsel %vm564, %v322, 1e+30
    %v622 = vsel %vm565, %v323, 1e+30
    %v623 = vsel %vm566, %v324, 1e+30
    %v624 = vsel %vm567, %v325, 1e+30
    %v625 = vsel %vm568, %v326, 1e+30
    %v626 = vmin.f32 %v610, %v614
    %v627 = vmin.f32 %v611, %v615
    %v628 = vmin.f32 %v612, %v616
    %v629 = vmin.f32 %v613, %v617
    %v630 = vmin.f32 %v626, %v618
    %v631 = vmin.f32 %v627, %v619
    %v632 = vmin.f32 %v628, %v620
    %v633 = vmin.f32 %v629, %v621
    %v634 = vmin.f32 %v630, %v622
    %v635 = vmin.f32 %v631, %v623
    %v636 = vmin.f32 %v632, %v624
    %v637 = vmin.f32 %v633, %v625
    %v638 = vmin.f32 %v634, %v635
    %v639 = vmin.f32 %v636, %v637
    %v640 = vmin.f32 %v638, %v639
    %v641 = vrot.slane %v640, 4
    %v642 = vmin.f32 %v640, %v641
    %v643 = vrot.slane %v642, 2
    %v644 = vmin.f32 %v642, %v643
    %v645 = vrot.slane %v644, 1
    %v646 = vmin.f32 %v644, %v645
    %v647 = vmin.f32 %v609, %v646
    %648 = vst [vmem:[#allocation3] sm:$0x1] %v647
    // Predicated region
    $region34: #{tpu_custom_call.1} parent=1 // pred_check
      %p649 = pneg %p27
    $region35: #{tpu_custom_call.1} parent=1 // pred_check_branch
      %651 = sbr.rel (%p649) target = $region37
    $region36: #{tpu_custom_call.1} parent=1 // pred_region
      %v652 = vld [vmem:[#allocation2] sm:$0x1]
      %v653 = vmax.f32 %v652, 1e-12
      %v654 = vrsqrt.pop %v653
      %v655 = vmul.f32 %v654, %v653
      %v656 = vmul.f32 %v655, %v654
      %v657 = vmul.f32 0.5, %v656
      %v658 = vsub.f32 1.5, %v657
      %v659 = vmul.f32 %v654, %v658
      %v660 = vmul.f32 %v653, %v659
      %vm661 = vcmp.eq.f32.partialorder %v653, inf
      %v662 = vsel %vm661, %v653, %v660
      %vm663 = vcmp.eq.f32.partialorder %v653, 0.0
      %v664 = vand.u32 %v653, 2147483648
      %v665 = vsel %vm663, %v664, %v662
      %v666 = vld [vmem:[#allocation3] sm:$0x1]
      %v667 = vmax.f32 %v666, 1e-12
      %v668 = vrsqrt.pop %v667
      %v669 = vmul.f32 %v668, %v667
      %v670 = vmul.f32 %v669, %v668
      %v671 = vmul.f32 0.5, %v670
      %v672 = vsub.f32 1.5, %v671
      %v673 = vmul.f32 %v668, %v672
      %v674 = vmul.f32 %v667, %v673
      %vm675 = vcmp.eq.f32.partialorder %v667, inf
      %v676 = vsel %vm675, %v667, %v674
      %vm677 = vcmp.eq.f32.partialorder %v667, 0.0
      %v678 = vand.u32 %v667, 2147483648
      %v679 = vsel %vm677, %v678, %v676
      %v680 = vsub.f32 %v665, %v679
      %v681 = vadd.f32 %v680, 0.3
      %v682 = vmax.f32 %v681, 0.0
      %683 = vst [vmem:[#allocation4] sm:$0x1] %v682
    $region37: #{tpu_custom_call.1} parent=1 // pred_fallthru
      _
    // Predicated region
    $region38: #{tpu_custom_call.1} parent=1 // pred_check
      _
    $region39: #{tpu_custom_call.1} parent=1 // pred_check_branch
      %685 = sbr.rel (0) target = $region41
    $region40: #{tpu_custom_call.1} parent=1 // pred_region
      %687 = vsyncadd [#allocation5], 0
      %s689 = sshll.u32 [#allocation4], 4
      %s690 = int_to_ptr.vmem [resolvable:$true] %s689
      %s691 = sshll.u32 %s7, 4
      %s692 = int_to_ptr.hbm [resolvable:$true] %s691
      %694 = dma.vmem_to_hbm [thread:$0]  %s690, 16, %s692, [#allocation5]
    $region41: #{tpu_custom_call.1} parent=1 // pred_fallthru
      _
    // Predicated region
    $region42: #{tpu_custom_call.1} parent=1 // pred_check
      _
    $region43: #{tpu_custom_call.1} parent=1 // pred_check_branch
      %696 = sbr.rel (0) target = $region45
    $region44: #{tpu_custom_call.1} parent=1 // pred_region
      %698 = dma.done [#allocation5], 16
    $region45: #{tpu_custom_call.1} parent=1 // pred_fallthru
      _
    %699 = vsyncpa [#allocation5], 1

</llo_original>
